<compile_context>
chip_gen: v7x
topology: tpu7x:2x2x1
jax: 0.10.0
libtpu: 0.0.40
codegen_flags: <defaults>
</compile_context>

<pallas_src>
import jax
import jax.numpy as jnp
from jax.experimental import pallas as pl
from jax.experimental.pallas import tpu as pltpu


def _round_up(x, m):
    return ((x + m - 1) // m) * m


def p_zy_kernel(y_ref, w_mu_ref, b_mu_ref, w_lv_ref, b_lv_ref, mu_ref, lv_ref):
    # Two small MXU matmuls, f32 accumulation, f32 bias add, cast at store only.
    y = y_ref[...]
    mu = jnp.dot(y, w_mu_ref[...], preferred_element_type=jnp.float32)
    lv = jnp.dot(y, w_lv_ref[...], preferred_element_type=jnp.float32)
    mu_ref[...] = (mu + b_mu_ref[...]).astype(mu_ref.dtype)
    lv_ref[...] = (lv + b_lv_ref[...]).astype(lv_ref.dtype)


def p_zy_forward(y, w1, b1, w_mu, b_mu, w_lv, b_lv, *,
                 block_b=4096,
                 compute_dtype=jnp.bfloat16,
                 min_pallas_batch=256):
    """y: (B, num_classes); w1: (C, H); b1: (H,);
    w_mu/w_lv: (H, latent); b_mu/b_lv: (latent,).
    Returns (mu, log_var), each (B, latent), in y.dtype.
    Set compute_dtype=jnp.float32 for full-precision matmul operands."""
    B, C = y.shape
    L = w_mu.shape[1]
    out_dtype = y.dtype
    f32 = jnp.float32

    # ---- algebraic fusion on the wrapper side (no nonlinearity in between) ----
    w_mu_f = jnp.dot(w1.astype(f32), w_mu.astype(f32))                       # (C, L)
    w_lv_f = jnp.dot(w1.astype(f32), w_lv.astype(f32))                       # (C, L)
    b_mu_f = jnp.dot(b1.astype(f32), w_mu.astype(f32)) + b_mu.astype(f32)    # (L,)
    b_lv_f = jnp.dot(b1.astype(f32), w_lv.astype(f32)) + b_lv.astype(f32)    # (L,)

    # ---- small-batch fast path: pallas_call launch cost dwarfs the work ----
    if B < min_pallas_batch:
        yf = y.astype(f32)
        mu = jnp.dot(yf, w_mu_f) + b_mu_f
        lv = jnp.dot(yf, w_lv_f) + b_lv_f
        return mu.astype(out_dtype), lv.astype(out_dtype)

    # ---- batch tiling: minimize padding; >=2 grid steps for v7x megacore ----
    n_tiles = pl.cdiv(B, block_b)
    if B >= 16:
        n_tiles = max(n_tiles, 2)          # shard "parallel" axis over both v7x TCs
    tb = _round_up(pl.cdiv(B, n_tiles), 8)
    B_pad = _round_up(B, tb)
    grid = (B_pad // tb,)

    # Only the batch dim is padded; C and the output lane dim stay unpadded.
    y_c = y.astype(compute_dtype)
    if B_pad != B:
        y_c = jnp.zeros((B_pad, C), compute_dtype).at[:B, :].set(y_c)

    w_mu_c = w_mu_f.astype(compute_dtype)
    w_lv_c = w_lv_f.astype(compute_dtype)
    b_mu_2d = b_mu_f.reshape(1, L)         # kept f32: bias add stays in f32 (VPU)
    b_lv_2d = b_lv_f.reshape(1, L)

    in_bytes = jnp.dtype(compute_dtype).itemsize
    out_bytes = jnp.dtype(out_dtype).itemsize
    cost = pl.CostEstimate(
        flops=2 * B_pad * C * (2 * L),
        transcendentals=0,
        bytes_accessed=(B_pad * C + 2 * C * L) * in_bytes
        + 2 * L * 4
        + 2 * B_pad * L * out_bytes,
    )

    mu_p, lv_p = pl.pallas_call(
        p_zy_kernel,
        out_shape=(
            jax.ShapeDtypeStruct((B_pad, L), out_dtype),
            jax.ShapeDtypeStruct((B_pad, L), out_dtype),
        ),
        grid_spec=pl.GridSpec(
            grid=grid,
            in_specs=[
                pl.BlockSpec((tb, C), lambda i: (i, 0)),   # batch-tiled activations
                pl.BlockSpec((C, L), lambda i: (0, 0)),    # resident fused W_mu (bf16)
                pl.BlockSpec((1, L), lambda i: (0, 0)),    # resident b_mu (f32)
                pl.BlockSpec((C, L), lambda i: (0, 0)),    # resident fused W_lv (bf16)
                pl.BlockSpec((1, L), lambda i: (0, 0)),    # resident b_lv (f32)
            ],
            out_specs=(
                pl.BlockSpec((tb, L), lambda i: (i, 0)),
                pl.BlockSpec((tb, L), lambda i: (i, 0)),
            ),
        ),
        compiler_params=pltpu.CompilerParams(
            dimension_semantics=("parallel",),
        ),
        cost_estimate=cost,
    )(y_c, w_mu_c, b_mu_2d, w_lv_c, b_lv_2d)

    if B_pad != B:
        mu_p = mu_p[:B]
        lv_p = lv_p[:B]
    return mu_p, lv_p


def init_params(key, latent_size, num_classes, H):
    # Deterministic synthetic init mimicking nn.Linear uniform(-1/sqrt(fan_in), 1/sqrt(fan_in)).
    k1, k2, k3, k4, k5, k6 = jax.random.split(key, 6)
    bound1 = 1.0 / (num_classes ** 0.5)
    bound2 = 1.0 / (H ** 0.5)
    w1 = jax.random.uniform(k1, (num_classes, H), jnp.float32, -bound1, bound1)
    b1 = jax.random.uniform(k2, (H,), jnp.float32, -bound1, bound1)
    w_mu = jax.random.uniform(k3, (H, latent_size), jnp.float32, -bound2, bound2)
    b_mu = jax.random.uniform(k4, (latent_size,), jnp.float32, -bound2, bound2)
    w_lv = jax.random.uniform(k5, (H, latent_size), jnp.float32, -bound2, bound2)
    b_lv = jax.random.uniform(k6, (latent_size,), jnp.float32, -bound2, bound2)
    return w1, b1, w_mu, b_mu, w_lv, b_lv


if __name__ == "__main__":
    latent_size, num_classes, H = 16, 10, 32

    key = jax.random.PRNGKey(0)
    ky, ky2, kp = jax.random.split(key, 3)
    w1, b1, w_mu, b_mu, w_lv, b_lv = init_params(kp, latent_size, num_classes, H)

    def reference(y):
        # Plain JAX, same math as the PyTorch module (unfused order).
        z = y @ w1 + b1
        return z @ w_mu + b_mu, z @ w_lv + b_lv

    # 1) tiny batch -> auto-dispatch takes the plain-jnp fast path (f32)
    y_small = jax.random.normal(ky, (4, num_classes), jnp.float32)
    mu_s, lv_s = p_zy_forward(y_small, w1, b1, w_mu, b_mu, w_lv, b_lv)

    # 2) tiny batch forced through the Pallas kernel (exercises batch padding)
    mu_sk, lv_sk = p_zy_forward(y_small, w1, b1, w_mu, b_mu, w_lv, b_lv,
                                min_pallas_batch=0)

    # 3) bigger batch -> Pallas path with a 2-step "parallel" grid (v7x megacore)
    y_big = jax.random.normal(ky2, (512, num_classes), jnp.float32)
    mu_b, lv_b = p_zy_forward(y_big, w1, b1, w_mu, b_mu, w_lv, b_lv)

    jax.block_until_ready((mu_s, lv_s, mu_sk, lv_sk, mu_b, lv_b))

    mu_ref_s, lv_ref_s = reference(y_small)
    mu_ref_b, lv_ref_b = reference(y_big)

    assert mu_s.shape == (4, latent_size) and lv_s.shape == (4, latent_size)
    assert mu_sk.shape == (4, latent_size) and lv_sk.shape == (4, latent_size)
    assert mu_b.shape == (512, latent_size) and lv_b.shape == (512, latent_size)

    # fast path is f32 end-to-end -> tight tolerance
    assert jnp.allclose(mu_s, mu_ref_s, atol=1e-4, rtol=1e-4)
    assert jnp.allclose(lv_s, lv_ref_s, atol=1e-4, rtol=1e-4)
    # pallas path uses bf16 matmul operands (f32 accumulation / f32 bias add)
    assert jnp.allclose(mu_sk, mu_ref_s, atol=3e-2, rtol=3e-2)
    assert jnp.allclose(lv_sk, lv_ref_s, atol=3e-2, rtol=3e-2)
    assert jnp.allclose(mu_b, mu_ref_b, atol=3e-2, rtol=3e-2)
    assert jnp.allclose(lv_b, lv_ref_b, atol=3e-2, rtol=3e-2)

    print("KERNEL_OK")
</pallas_src>

<mosaic_0001>
module attributes {stable_mosaic.version = 11 : i64} {
  func.func @p_zy_kernel(%arg0: i32, %arg1: memref<8x10xbf16, #tpu.memory_space<vmem>>, %arg2: memref<10x16xbf16, #tpu.memory_space<vmem>>, %arg3: memref<1x16xf32, #tpu.memory_space<vmem>>, %arg4: memref<10x16xbf16, #tpu.memory_space<vmem>>, %arg5: memref<1x16xf32, #tpu.memory_space<vmem>>, %arg6: memref<8x16xf32, #tpu.memory_space<vmem>>, %arg7: memref<8x16xf32, #tpu.memory_space<vmem>>) attributes {dimension_semantics = [#tpu.dimension_semantics<parallel>], iteration_bounds = array<i64: 1>, scalar_prefetch = 0 : i64, scratch_operands = 0 : i64, tpu.core_type = #tpu.core_type<tc>, window_params = [{transform_indices = @transform_0, window_bounds = array<i64: 8, 10>}, {pipeline_mode = #tpu.pipeline_mode<synchronous>, transform_indices = @transform_1, window_bounds = array<i64: 10, 16>}, {pipeline_mode = #tpu.pipeline_mode<synchronous>, transform_indices = @transform_2, window_bounds = array<i64: 1, 16>}, {pipeline_mode = #tpu.pipeline_mode<synchronous>, transform_indices = @transform_3, window_bounds = array<i64: 10, 16>}, {pipeline_mode = #tpu.pipeline_mode<synchronous>, transform_indices = @transform_4, window_bounds = array<i64: 1, 16>}, {transform_indices = @transform_5, window_bounds = array<i64: 8, 16>}, {transform_indices = @transform_6, window_bounds = array<i64: 8, 16>}]} {
    %c0 = arith.constant 0 : index
    %c0_0 = arith.constant 0 : index
    %0 = vector.load %arg1[%c0, %c0_0] : memref<8x10xbf16, #tpu.memory_space<vmem>>, vector<8x10xbf16>
    %c0_1 = arith.constant 0 : index
    %c0_2 = arith.constant 0 : index
    %1 = vector.load %arg2[%c0_1, %c0_2] : memref<10x16xbf16, #tpu.memory_space<vmem>>, vector<10x16xbf16>
    %cst = arith.constant dense<0.000000e+00> : vector<8x16xf32>
    %2 = tpu.matmul %0, %1, %cst {dimension_numbers = #tpu.dot_dimension_numbers<[1], [0], [0], [1], [0, 0, 1, 1], [], []>} : vector<8x10xbf16>, vector<10x16xbf16>, vector<8x16xf32> -> vector<8x16xf32>
    %c0_3 = arith.constant 0 : index
    %c0_4 = arith.constant 0 : index
    %3 = vector.load %arg4[%c0_3, %c0_4] : memref<10x16xbf16, #tpu.memory_space<vmem>>, vector<10x16xbf16>
    %cst_5 = arith.constant dense<0.000000e+00> : vector<8x16xf32>
    %4 = tpu.matmul %0, %3, %cst_5 {dimension_numbers = #tpu.dot_dimension_numbers<[1], [0], [0], [1], [0, 0, 1, 1], [], []>} : vector<8x10xbf16>, vector<10x16xbf16>, vector<8x16xf32> -> vector<8x16xf32>
    %c0_6 = arith.constant 0 : index
    %c0_7 = arith.constant 0 : index
    %5 = vector.load %arg3[%c0_6, %c0_7] : memref<1x16xf32, #tpu.memory_space<vmem>>, vector<1x16xf32>
    %6 = vector.broadcast %5 : vector<1x16xf32> to vector<8x16xf32>
    %7 = arith.addf %2, %6 : vector<8x16xf32>
    %c0_8 = arith.constant 0 : index
    %c0_9 = arith.constant 0 : index
    %8 = vector.load %arg6[%c0_8, %c0_9] : memref<8x16xf32, #tpu.memory_space<vmem>>, vector<8x16xf32>
    tpu.vector_store %arg6[%c0_8, %c0_9], %7 {strides = array<i32>} : memref<8x16xf32, #tpu.memory_space<vmem>>, vector<8x16xf32>,
    %c0_10 = arith.constant 0 : index
    %c0_11 = arith.constant 0 : index
    %9 = vector.load %arg5[%c0_10, %c0_11] : memref<1x16xf32, #tpu.memory_space<vmem>>, vector<1x16xf32>
    %10 = vector.broadcast %9 : vector<1x16xf32> to vector<8x16xf32>
    %11 = arith.addf %4, %10 : vector<8x16xf32>
    %c0_12 = arith.constant 0 : index
    %c0_13 = arith.constant 0 : index
    %12 = vector.load %arg7[%c0_12, %c0_13] : memref<8x16xf32, #tpu.memory_space<vmem>>, vector<8x16xf32>
    tpu.vector_store %arg7[%c0_12, %c0_13], %11 {strides = array<i32>} : memref<8x16xf32, #tpu.memory_space<vmem>>, vector<8x16xf32>,
    return
  }
  func.func @transform_0(%arg0: i32) -> (i32, i32) {
    %c0_i32 = arith.constant 0 : i32
    %c0_i32_0 = arith.constant 0 : i32
    return %arg0, %c0_i32 : i32, i32
  }
  func.func @transform_1(%arg0: i32) -> (i32, i32) {
    %c0_i32 = arith.constant 0 : i32
    %c0_i32_0 = arith.constant 0 : i32
    %c0_i32_1 = arith.constant 0 : i32
    return %c0_i32, %c0_i32_0 : i32, i32
  }
  func.func @transform_2(%arg0: i32) -> (i32, i32) {
    %c0_i32 = arith.constant 0 : i32
    %c0_i32_0 = arith.constant 0 : i32
    %c0_i32_1 = arith.constant 0 : i32
    return %c0_i32, %c0_i32_0 : i32, i32
  }
  func.func @transform_3(%arg0: i32) -> (i32, i32) {
    %c0_i32 = arith.constant 0 : i32
    %c0_i32_0 = arith.constant 0 : i32
    %c0_i32_1 = arith.constant 0 : i32
    return %c0_i32, %c0_i32_0 : i32, i32
  }
  func.func @transform_4(%arg0: i32) -> (i32, i32) {
    %c0_i32 = arith.constant 0 : i32
    %c0_i32_0 = arith.constant 0 : i32
    %c0_i32_1 = arith.constant 0 : i32
    return %c0_i32, %c0_i32_0 : i32, i32
  }
  func.func @transform_5(%arg0: i32) -> (i32, i32) {
    %c0_i32 = arith.constant 0 : i32
    %c0_i32_0 = arith.constant 0 : i32
    return %arg0, %c0_i32 : i32, i32
  }
  func.func @transform_6(%arg0: i32) -> (i32, i32) {
    %c0_i32 = arith.constant 0 : i32
    %c0_i32_0 = arith.constant 0 : i32
    return %arg0, %c0_i32 : i32, i32
  }
}

</mosaic_0001>

<llo_original>
// kernel: tpu_custom_call.1
$region0: #{tpu_custom_call.1}
  #allocation0 [shape = 'u32[]', space=smem, size = 0x4, offset = 0x4, fixed_abs, tag = 'smem constant byte address 0x4 - core index']
  #allocation1 [shape = 'u32[144,128]{1,0:T(1,128)}', space=vmem, size = 0x12000, scoped, tag = 'internal scratch']
  %s0 = inlined_call_operand.hbm [shape: bf16[8,10], index: 0, kind: input, shape index: {}]
  %s1 = inlined_call_operand.hbm [shape: bf16[10,16], index: 1, kind: input, shape index: {}]
  %s2 = inlined_call_operand.vmem [shape: f32[1,16], index: 2, kind: input, shape index: {}]
  %s3 = inlined_call_operand.vmem [shape: bf16[10,16], index: 3, kind: input, shape index: {}]
  %s4 = inlined_call_operand.vmem [shape: f32[1,16], index: 4, kind: input, shape index: {}]
  %s5 = inlined_call_operand.hbm [shape: f32[8,16], index: 5, kind: output, shape index: {0}]
  %s6 = inlined_call_operand.hbm [shape: f32[8,16], index: 6, kind: output, shape index: {1}]
  %7 = xla_tuple %s5, %s6
  %s8 = sld [smem:[#allocation0]]
  $region46: #{tpu_custom_call.1} parent=0
    _
  %s10 = ssub.s32 1, %s8
  %s11 = scalar_select 0, %s10, %s8
  $region1: #{tpu_custom_call.1} parent=0
    #allocation2 [shape = 'u8[2048]{0}', space=vmem, size = 0x800, scoped, tag = 'input window, operand 0, single buffered']
    #allocation3 [shape = 's32[1]{0}', space=sflag, size = 0x4, scoped, tag = 'scoped memory for tpu_custom_call.1']
    #allocation4 [shape = 's32[1]{0}', space=sflag, size = 0x4, scoped, tag = 'scoped memory for tpu_custom_call.1']
    #allocation5 [shape = 'u8[4096]{0}', space=vmem, size = 0x1000, scoped, tag = 'input window, operand 1, single buffered']
    #allocation6 [shape = 's32[1]{0}', space=sflag, size = 0x4, scoped, tag = 'scoped memory for tpu_custom_call.1']
    #allocation7 [shape = 'u8[4096]{0}', space=vmem, size = 0x1000, scoped, tag = 'output window, operand 0, single buffered']
    #allocation8 [shape = 'u8[4096]{0}', space=vmem, size = 0x1000, scoped, tag = 'output window, operand 1, single buffered']
    #allocation9 [shape = 's32[1]{0}', space=sflag, size = 0x4, scoped, tag = 'scoped memory for tpu_custom_call.1']
    %12 = vsyncpa [#allocation3], 0
    %13 = vsyncpa [#allocation6], 0
    %14 = vsyncpa [#allocation4], 0
    %15 = vsyncpa [#allocation9], 0
    // Predicated region
    $region2: #{tpu_custom_call.1} parent=1 // pred_check
      _
    $region3: #{tpu_custom_call.1} parent=1 // pred_check_branch
      %17 = sbr.rel (0) target = $region5
    $region4: #{tpu_custom_call.1} parent=1 // pred_region
      %s19 = ssub.s32 64, 64
      %20 = vsyncadd [#allocation3], %s19
      %s22 = sshll.u32 [#allocation2], 4
      %s23 = int_to_ptr.vmem [resolvable:$true] %s22
      %25 = dma.hbm_to_vmem [thread:$0]  %s0, 64, %s23, [#allocation3]
    $region5: #{tpu_custom_call.1} parent=1 // pred_fallthru
      _
    // Predicated region
    $region6: #{tpu_custom_call.1} parent=1 // pred_check
      _
    $region7: #{tpu_custom_call.1} parent=1 // pred_check_branch
      %27 = sbr.rel (0) target = $region9
    $region8: #{tpu_custom_call.1} parent=1 // pred_region
      %s29 = ssub.s32 128, 128
      %30 = vsyncadd [#allocation6], %s29
      %s31 = sshll.u32 [#allocation5], 4
      %s32 = int_to_ptr.vmem [resolvable:$true] %s31
      %37 = dma.hbm_to_vmem [thread:$0]  %s1, 128, %s32, [#allocation6], 64, 64, 4
    $region9: #{tpu_custom_call.1} parent=1 // pred_fallthru
      _
    // Predicated region
    $region10: #{tpu_custom_call.1} parent=1 // pred_check
      _
    $region11: #{tpu_custom_call.1} parent=1 // pred_check_branch
      %39 = sbr.rel (0) target = $region13
    $region12: #{tpu_custom_call.1} parent=1 // pred_region
      _
    $region13: #{tpu_custom_call.1} parent=1 // pred_fallthru
      _
    // Predicated region
    $region14: #{tpu_custom_call.1} parent=1 // pred_check
      _
    $region15: #{tpu_custom_call.1} parent=1 // pred_check_branch
      %41 = sbr.rel (0) target = $region17
    $region16: #{tpu_custom_call.1} parent=1 // pred_region
      _
    $region17: #{tpu_custom_call.1} parent=1 // pred_fallthru
      _
    // Predicated region
    $region18: #{tpu_custom_call.1} parent=1 // pred_check
      _
    $region19: #{tpu_custom_call.1} parent=1 // pred_check_branch
      %43 = sbr.rel (0) target = $region21
    $region20: #{tpu_custom_call.1} parent=1 // pred_region
      _
    $region21: #{tpu_custom_call.1} parent=1 // pred_fallthru
      _
    // Predicated region
    $region22: #{tpu_custom_call.1} parent=1 // pred_check
      _
    $region23: #{tpu_custom_call.1} parent=1 // pred_check_branch
      %45 = sbr.rel (0) target = $region25
    $region24: #{tpu_custom_call.1} parent=1 // pred_region
      %46 = dma.done [#allocation3], 64
    $region25: #{tpu_custom_call.1} parent=1 // pred_fallthru
      _
    // Predicated region
    $region26: #{tpu_custom_call.1} parent=1 // pred_check
      _
    $region27: #{tpu_custom_call.1} parent=1 // pred_check_branch
      %48 = sbr.rel (0) target = $region29
    $region28: #{tpu_custom_call.1} parent=1 // pred_region
      %49 = dma.done [#allocation6], 128
    $region29: #{tpu_custom_call.1} parent=1 // pred_fallthru
      _
    %v51 = vld [vmem:[#allocation2] sm:$0xf]
    %v52 = vld [vmem:[#allocation5] sm:$0xf]
    %v53 = vld [vmem:[#allocation5 + $0x4] sm:$0x1]
    %v54 = vld [vmem:[%s3] sm:$0xf]
    %v55 = vld [vmem:[%s3 + $0x4] sm:$0x1]
    %v56 = vld [vmem:[%s2] sm:$0x1]
    %v58 = vlaneseq
    %v59 = vshrl.u32 %v58, 7
    %v60 = vsub.s32 0, %v59
    %v61 = vrot.slane %v56, %v60
    %v65 = vunpack.c.l.b16 %v52
    %v66 = vunpack.c.l.b16 %v53
    %v67 = vpack.c.b16 %v66, %v65
    %vm68 = vcmask 80896
    %v70 = vsel %vm68, %v51, 0
    %vm72 = vcmask 1044480
    %v74 = vsel %vm72, %v67, 0
    %76 = vmatprep.subr.bf16.mxu0 0
    %77 = vmatpush1.bf16.msra.mxu0 %v74
    %78 = vmatprep.subr.bf16.mxu0 0
    %79 = vmatpush1.bf16.msra.mxu0 0
    %80 = vmatprep.subr.bf16.mxu0 0
    %81 = vmatpush1.bf16.msra.mxu0 0
    %82 = vmatprep.subr.bf16.mxu0 0
    %83 = vmatpush1.bf16.msra.mxu0 0
    %84 = vmatprep.subr.bf16.mxu0 0
    %85 = vmatpush1.bf16.msra.mxu0 0
    %86 = vmatprep.subr.bf16.mxu0 0
    %87 = vmatpush1.bf16.msra.mxu0 0
    %88 = vmatprep.subr.bf16.mxu0 0
    %89 = vmatpush1.bf16.msra.mxu0 0
    %90 = vmatprep.subr.bf16.mxu0 0
    %91 = vmatpush1.bf16.msra.mxu0 0
    %92 = vmatprep.subr.bf16.mxu0 0
    %93 = vmatpush1.bf16.msra.mxu0 0
    %94 = vmatprep.subr.bf16.mxu0 0
    %95 = vmatpush1.bf16.msra.mxu0 0
    %96 = vmatprep.subr.bf16.mxu0 0
    %97 = vmatpush1.bf16.msra.mxu0 0
    %98 = vmatprep.subr.bf16.mxu0 0
    %99 = vmatpush1.bf16.msra.mxu0 0
    %100 = vmatprep.subr.bf16.mxu0 0
    %101 = vmatpush1.bf16.msra.mxu0 0
    %102 = vmatprep.subr.bf16.mxu0 0
    %103 = vmatpush1.bf16.msra.mxu0 0
    %104 = vmatprep.subr.bf16.mxu0 0
    %105 = vmatpush1.bf16.msra.mxu0 0
    %106 = vmatprep.subr.bf16.mxu0 0
    %107 = vmatpush1.bf16.msra.mxu0 0
    %108 = vmatprep.mubr.bf16.mxu0 0
    %109 = vmatmul.mubr.bf16.gmra.mrb[0].mxu0 %v70
    %v110 = vpop.f32.mrb[0].mxu0
    %v111 = vadd.f32 %v61, %v110
    %v112 = vpop.f32.mrb[0].mxu0
    %v113 = vpop.f32.mrb[0].mxu0
    %v114 = vpop.f32.mrb[0].mxu0
    %115 = vdwg.mxu0
    %vm116 = vcmask 130048
    %117 = vst.msk [vmem:[#allocation7] sm:$0xff] %vm116, %v111
    %v118 = vld [vmem:[%s4] sm:$0x1]
    %v120 = vlaneseq
    %v121 = vshrl.u32 %v120, 7
    %v122 = vsub.s32 0, %v121
    %v123 = vrot.slane %v118, %v122
    %v127 = vunpack.c.l.b16 %v54
    %v128 = vunpack.c.l.b16 %v55
    %v129 = vpack.c.b16 %v128, %v127
    %v131 = vsel %vm72, %v129, 0
    %133 = vmatprep.subr.bf16.mxu0 0
    %134 = vmatpush1.bf16.msra.mxu0 %v131
    %135 = vmatprep.subr.bf16.mxu0 0
    %136 = vmatpush1.bf16.msra.mxu0 0
    %137 = vmatprep.subr.bf16.mxu0 0
    %138 = vmatpush1.bf16.msra.mxu0 0
    %139 = vmatprep.subr.bf16.mxu0 0
    %140 = vmatpush1.bf16.msra.mxu0 0
    %141 = vmatprep.subr.bf16.mxu0 0
    %142 = vmatpush1.bf16.msra.mxu0 0
    %143 = vmatprep.subr.bf16.mxu0 0
    %144 = vmatpush1.bf16.msra.mxu0 0
    %145 = vmatprep.subr.bf16.mxu0 0
    %146 = vmatpush1.bf16.msra.mxu0 0
    %147 = vmatprep.subr.bf16.mxu0 0
    %148 = vmatpush1.bf16.msra.mxu0 0
    %149 = vmatprep.subr.bf16.mxu0 0
    %150 = vmatpush1.bf16.msra.mxu0 0
    %151 = vmatprep.subr.bf16.mxu0 0
    %152 = vmatpush1.bf16.msra.mxu0 0
    %153 = vmatprep.subr.bf16.mxu0 0
    %154 = vmatpush1.bf16.msra.mxu0 0
    %155 = vmatprep.subr.bf16.mxu0 0
    %156 = vmatpush1.bf16.msra.mxu0 0
    %157 = vmatprep.subr.bf16.mxu0 0
    %158 = vmatpush1.bf16.msra.mxu0 0
    %159 = vmatprep.subr.bf16.mxu0 0
    %160 = vmatpush1.bf16.msra.mxu0 0
    %161 = vmatprep.subr.bf16.mxu0 0
    %162 = vmatpush1.bf16.msra.mxu0 0
    %163 = vmatprep.subr.bf16.mxu0 0
    %164 = vmatpush1.bf16.msra.mxu0 0
    %165 = vmatprep.mubr.bf16.mxu0 0
    %166 = vmatmul.mubr.bf16.gmra.mrb[0].mxu0 %v70
    %v167 = vpop.f32.mrb[0].mxu0
    %v168 = vadd.f32 %v123, %v167
    %v169 = vpop.f32.mrb[0].mxu0
    %v170 = vpop.f32.mrb[0].mxu0
    %v171 = vpop.f32.mrb[0].mxu0
    %172 = vdwg.mxu0
    %173 = vst.msk [vmem:[#allocation8] sm:$0xff] %vm116, %v168
    // Predicated region
    $region30: #{tpu_custom_call.1} parent=1 // pred_check
      _
    $region31: #{tpu_custom_call.1} parent=1 // pred_check_branch
      %175 = sbr.rel (0) target = $region33
    $region32: #{tpu_custom_call.1} parent=1 // pred_region
      %s177 = ssub.s32 128, 128
      %178 = vsyncadd [#allocation4], %s177
      %s180 = sshll.u32 [#allocation7], 4
      %s181 = int_to_ptr.vmem [resolvable:$true] %s180
      %183 = dma.vmem_to_hbm [thread:$0]  %s181, 128, %s5, [#allocation4]
    $region33: #{tpu_custom_call.1} parent=1 // pred_fallthru
      _
    // Predicated region
    $region34: #{tpu_custom_call.1} parent=1 // pred_check
      _
    $region35: #{tpu_custom_call.1} parent=1 // pred_check_branch
      %185 = sbr.rel (0) target = $region37
    $region36: #{tpu_custom_call.1} parent=1 // pred_region
      %s187 = ssub.s32 128, 128
      %188 = vsyncadd [#allocation9], %s187
      %s190 = sshll.u32 [#allocation8], 4
      %s191 = int_to_ptr.vmem [resolvable:$true] %s190
      %193 = dma.vmem_to_hbm [thread:$0]  %s191, 128, %s6, [#allocation9]
    $region37: #{tpu_custom_call.1} parent=1 // pred_fallthru
      _
    // Predicated region
    $region38: #{tpu_custom_call.1} parent=1 // pred_check
      _
    $region39: #{tpu_custom_call.1} parent=1 // pred_check_branch
      %195 = sbr.rel (0) target = $region41
    $region40: #{tpu_custom_call.1} parent=1 // pred_region
      %196 = dma.done [#allocation4], 128
    $region41: #{tpu_custom_call.1} parent=1 // pred_fallthru
      _
    // Predicated region
    $region42: #{tpu_custom_call.1} parent=1 // pred_check
      _
    $region43: #{tpu_custom_call.1} parent=1 // pred_check_branch
      %198 = sbr.rel (0) target = $region45
    $region44: #{tpu_custom_call.1} parent=1 // pred_region
      %199 = dma.done [#allocation9], 128
    $region45: #{tpu_custom_call.1} parent=1 // pred_fallthru
      _
    %200 = vsyncpa [#allocation3], 1
    %201 = vsyncpa [#allocation6], 1
    %202 = vsyncpa [#allocation4], 1
    %203 = vsyncpa [#allocation9], 1

</llo_original>
